<compile_context>
chip_gen: v7x
topology: tpu7x:2x2x1
jax: 0.10.0
libtpu: 0.0.40
codegen_flags: <defaults>
</compile_context>

<pallas_src>
import functools

import jax
import jax.numpy as jnp
from jax.experimental import pallas as pl
from jax.experimental.pallas import tpu as pltpu


# ---------------------------------------------------------------------------
# fused kernel: concat -> pad -> convT1 -> ReLU -> pad -> convT2  (one image)
# ---------------------------------------------------------------------------
def _double_conv_up_kernel(up_ref, skip_ref, w1_ref, b1_ref, w2_ref, b2_ref,
                           o_ref, x1pad_ref, l1_ref, hpad_ref, l2_ref,
                           *, H, W, Cu, Cs):
    Cin1 = Cu + Cs
    Ho1 = H + 2                      # conv1 output height
    Wp1 = W + 4                      # conv1 padded input width (per channel)
    Ho2 = H + 4                      # conv2 output height
    CW1 = Cin1 * Wp1                 # packed row width of conv1 input
    CW2 = hpad_ref.shape[1]          # = Cout1 * Wp2 (packed conv2 input row)

    # --- stage concat(up, skip) into the zero-padded conv1 input -----------
    # x1pad[r, c*Wp1 + u] == (pad=2 of cat(up, skip))[r, u, c]
    x1pad_ref[...] = jnp.zeros_like(x1pad_ref)
    for c in range(Cu):                                   # statically unrolled
        x1pad_ref[pl.ds(2, H), pl.ds(c * Wp1 + 2, W)] = up_ref[0, c]
    for c in range(Cs):
        x1pad_ref[pl.ds(2, H), pl.ds((Cu + c) * Wp1 + 2, W)] = skip_ref[0, c]

    # --- conv-transpose 1 + bias + ReLU: one (Ho1, 3*CW1) x (3*CW1, *) matmul
    for ky in range(3):              # pack the 3 shifted row bands
        l1_ref[:, pl.ds(ky * CW1, CW1)] = x1pad_ref[pl.ds(ky, Ho1), :]
    h = jnp.dot(l1_ref[...], w1_ref[...], preferred_element_type=jnp.float32)
    h = jnp.maximum(h + b1_ref[...], 0.0)

    # --- intermediate stays in VMEM: it *is* the zero-padded conv2 input ---
    # (w1_row / b1_row already leave the 2-col borders of each channel at 0)
    hpad_ref[...] = jnp.zeros_like(hpad_ref)
    hpad_ref[pl.ds(2, Ho1), :] = h.astype(hpad_ref.dtype)

    # --- conv-transpose 2 + bias: second single matmul, lane-dense store ---
    for ky in range(3):
        l2_ref[:, pl.ds(ky * CW2, CW2)] = hpad_ref[pl.ds(ky, Ho2), :]
    y = jnp.dot(l2_ref[...], w2_ref[...], preferred_element_type=jnp.float32)
    o_ref[0] = (y + b2_ref[...]).astype(o_ref.dtype)


# ---------------------------------------------------------------------------
# one-time (per layer geometry) weight / bias preparation
# ---------------------------------------------------------------------------
def _flip_ct_weight(w):
    # PyTorch ConvTranspose2d weight (Cin, Cout, 3, 3)
    #   -> what[ky, kx, ci, co] = w[ci, co, 2-ky, 2-kx]
    return jnp.transpose(w[:, :, ::-1, ::-1], (2, 3, 0, 1))


def _row_toeplitz(w, in_w_pad, out_cols_per_ch, out_x_off, out_x_cnt):
    """Row-Toeplitz matrix for a 3x3 ConvTranspose2d in the packed-row layout.

    LHS columns are packed as [ky, ci, u] (u = padded input column, width
    in_w_pad); output columns as [co, v] (out_cols_per_ch per channel, valid
    output pixel x sits at v = out_x_off + x, all other columns are exactly 0).
    """
    what = _flip_ct_weight(w)                              # (3, 3, Cin, Cout)
    cin, cout = w.shape[0], w.shape[1]
    kx = jnp.arange(3)[:, None, None]
    u = jnp.arange(in_w_pad)[None, :, None]
    v = jnp.arange(out_cols_per_ch)[None, None, :]
    x = v - out_x_off
    sel = (x >= 0) & (x < out_x_cnt) & (u == x + kx)
    s = sel.astype(w.dtype)                                # (3, in_w_pad, cols)
    w5 = jnp.einsum('ykio,kuv->yiuov', what, s)            # (3,Cin,u,Cout,v)
    return w5.reshape(3 * cin * in_w_pad, cout * out_cols_per_ch)


def _bias_row(b, cols_per_ch, x_off, x_cnt):
    v = jnp.arange(cols_per_ch)
    valid = ((v >= x_off) & (v < x_off + x_cnt)).astype(b.dtype)
    return (b[:, None] * valid[None, :]).reshape(1, b.shape[0] * cols_per_ch)


def prepare_params(params, width):
    """Precompute geometry-specialised matrices. Call ONCE per layer/width."""
    W = width
    Wp1, Wo1, Wp2, Wo2 = W + 4, W + 2, W + 6, W + 4
    return {
        "w1_row": _row_toeplitz(params["w1"], Wp1, Wp2, 2, Wo1),
        "b1_row": _bias_row(params["b1"], Wp2, 2, Wo1),
        "w2_row": _row_toeplitz(params["w2"], Wp2, Wo2, 0, Wo2),
        "b2_row": _bias_row(params["b2"], Wo2, 0, Wo2),
    }


# ---------------------------------------------------------------------------
# wrapper (NCHW in / NCHW out, matching the PyTorch module)
# ---------------------------------------------------------------------------
def double_conv_up_forward(up_input, skip_input, prepared):
    """up_input (N,Cu,H,W), skip_input (N,Cs,H,W) -> (N, Cout, H+4, W+4)."""
    N, Cu, H, W = up_input.shape
    Cs = skip_input.shape[1]
    Cin1 = Cu + Cs
    Ho1, Wo1 = H + 2, W + 2
    Hp1, Wp1 = H + 4, W + 4
    Ho2, Wo2 = H + 4, W + 4
    Hp2, Wp2 = Ho1 + 4, Wo1 + 4
    Cout1 = prepared["b1_row"].shape[1] // Wp2
    Cout2 = prepared["b2_row"].shape[1] // Wo2
    dtype = up_input.dtype

    kernel = functools.partial(_double_conv_up_kernel, H=H, W=W, Cu=Cu, Cs=Cs)
    out_flat = pl.pallas_call(
        kernel,
        out_shape=jax.ShapeDtypeStruct((N, Ho2, Cout2 * Wo2), dtype),
        grid=(N,),
        in_specs=[
            pl.BlockSpec((1, Cu, H, W), lambda n: (n, 0, 0, 0)),
            pl.BlockSpec((1, Cs, H, W), lambda n: (n, 0, 0, 0)),
            pl.BlockSpec(prepared["w1_row"].shape, lambda n: (0, 0)),
            pl.BlockSpec(prepared["b1_row"].shape, lambda n: (0, 0)),
            pl.BlockSpec(prepared["w2_row"].shape, lambda n: (0, 0)),
            pl.BlockSpec(prepared["b2_row"].shape, lambda n: (0, 0)),
        ],
        out_specs=pl.BlockSpec((1, Ho2, Cout2 * Wo2), lambda n: (n, 0, 0)),
        scratch_shapes=[
            pltpu.VMEM((Hp1, Cin1 * Wp1), dtype),       # padded concat input
            pltpu.VMEM((Ho1, 3 * Cin1 * Wp1), dtype),   # conv1 packed LHS
            pltpu.VMEM((Hp2, Cout1 * Wp2), dtype),      # padded ReLU'd intermediate
            pltpu.VMEM((Ho2, 3 * Cout1 * Wp2), dtype),  # conv2 packed LHS
        ],
        compiler_params=pltpu.CompilerParams(
            dimension_semantics=("parallel",)),
    )(up_input, skip_input, prepared["w1_row"], prepared["b1_row"],
      prepared["w2_row"], prepared["b2_row"])

    # free row-major un-flatten + one cheap transpose back to NCHW
    out = out_flat.reshape(N, Ho2, Cout2, Wo2)
    return jnp.transpose(out, (0, 2, 1, 3))


# ---------------------------------------------------------------------------
# parameter init + pure-JAX reference
# ---------------------------------------------------------------------------
def init_params(key, channel_input, channel_output, final_channel=None):
    if final_channel is None:
        final_channel = channel_output
    k1, k2, k3, k4 = jax.random.split(key, 4)
    scale1 = 1.0 / (channel_input * 9) ** 0.5
    scale2 = 1.0 / (channel_output * 9) ** 0.5
    return {
        "w1": jax.random.uniform(k1, (channel_input, channel_output, 3, 3),
                                 jnp.float32, -scale1, scale1),
        "b1": jax.random.uniform(k2, (channel_output,),
                                 jnp.float32, -scale1, scale1),
        "w2": jax.random.uniform(k3, (channel_output, final_channel, 3, 3),
                                 jnp.float32, -scale2, scale2),
        "b2": jax.random.uniform(k4, (final_channel,),
                                 jnp.float32, -scale2, scale2),
    }


def _reference_forward(up_input, skip_input, params):
    """Pure-JAX NCHW reference (ConvTranspose2d == pad-2 flipped correlation)."""
    x = jnp.concatenate([up_input, skip_input], axis=1)

    def convt(x_nchw, w, b, relu):
        w_hat = jnp.transpose(w[:, :, ::-1, ::-1], (1, 0, 2, 3))  # OIHW
        y = jax.lax.conv_general_dilated(
            x_nchw, w_hat, window_strides=(1, 1),
            padding=[(2, 2), (2, 2)],
            dimension_numbers=("NCHW", "OIHW", "NCHW"))
        y = y + b[None, :, None, None]
        return jnp.maximum(y, 0.0) if relu else y

    x = convt(x, params["w1"], params["b1"], True)
    x = convt(x, params["w2"], params["b2"], False)
    return x


if __name__ == "__main__":
    key = jax.random.PRNGKey(0)
    k_up, k_skip, k_par = jax.random.split(key, 3)

    # up: 2 channels, skip: 2 channels -> channel_input = 4
    channel_input, channel_output = 4, 8
    up_input = jax.random.normal(k_up, (2, 2, 16, 16), jnp.float32)
    skip_input = jax.random.normal(k_skip, (2, 2, 16, 16), jnp.float32)
    params = init_params(k_par, channel_input, channel_output)

    prepared = prepare_params(params, width=16)          # hoisted, once per layer
    fwd = jax.jit(double_conv_up_forward)
    out = fwd(up_input, skip_input, prepared)
    out = jax.block_until_ready(out)
    assert out.shape == (2, channel_output, 20, 20), out.shape

    ref = _reference_forward(up_input, skip_input, params)
    err = float(jnp.max(jnp.abs(out - ref)))
    assert jnp.allclose(out, ref, rtol=1e-3, atol=1e-3), err

    print("KERNEL_OK")
</pallas_src>

<mosaic_0001>
module attributes {stable_mosaic.version = 11 : i64} {
  func.func @_double_conv_up_kernel(%arg0: i32, %arg1: memref<1x2x16x16xf32, #tpu.memory_space<vmem>>, %arg2: memref<1x2x16x16xf32, #tpu.memory_space<vmem>>, %arg3: memref<240x176xf32, #tpu.memory_space<vmem>>, %arg4: memref<1x176xf32, #tpu.memory_space<vmem>>, %arg5: memref<528x160xf32, #tpu.memory_space<vmem>>, %arg6: memref<1x160xf32, #tpu.memory_space<vmem>>, %arg7: memref<1x20x160xf32, #tpu.memory_space<vmem>>, %arg8: memref<20x80xf32, #tpu.memory_space<vmem>>, %arg9: memref<18x240xf32, #tpu.memory_space<vmem>>, %arg10: memref<22x176xf32, #tpu.memory_space<vmem>>, %arg11: memref<20x528xf32, #tpu.memory_space<vmem>>) attributes {dimension_semantics = [#tpu.dimension_semantics<parallel>], iteration_bounds = array<i64: 2>, scalar_prefetch = 0 : i64, scratch_operands = 4 : i64, tpu.core_type = #tpu.core_type<tc>, window_params = [{transform_indices = @transform_0, window_bounds = array<i64: 1, 2, 16, 16>}, {transform_indices = @transform_1, window_bounds = array<i64: 1, 2, 16, 16>}, {pipeline_mode = #tpu.pipeline_mode<synchronous>, transform_indices = @transform_2, window_bounds = array<i64: 240, 176>}, {pipeline_mode = #tpu.pipeline_mode<synchronous>, transform_indices = @transform_3, window_bounds = array<i64: 1, 176>}, {pipeline_mode = #tpu.pipeline_mode<synchronous>, transform_indices = @transform_4, window_bounds = array<i64: 528, 160>}, {pipeline_mode = #tpu.pipeline_mode<synchronous>, transform_indices = @transform_5, window_bounds = array<i64: 1, 160>}, {transform_indices = @transform_6, window_bounds = array<i64: 1, 20, 160>}]} {
    %cst = arith.constant 0.000000e+00 : f32
    %0 = vector.broadcast %cst : f32 to vector<20x80xf32>
    %c0 = arith.constant 0 : index
    %c0_0 = arith.constant 0 : index
    %1 = vector.load %arg8[%c0, %c0_0] : memref<20x80xf32, #tpu.memory_space<vmem>>, vector<20x80xf32>
    tpu.vector_store %arg8[%c0, %c0_0], %0 {strides = array<i32>} : memref<20x80xf32, #tpu.memory_space<vmem>>, vector<20x80xf32>,
    %c0_1 = arith.constant 0 : index
    %c0_2 = arith.constant 0 : index
    %c0_3 = arith.constant 0 : index
    %c0_4 = arith.constant 0 : index
    %2 = vector.load %arg1[%c0_1, %c0_2, %c0_3, %c0_4] : memref<1x2x16x16xf32, #tpu.memory_space<vmem>>, vector<1x1x16x16xf32>
    %3 = vector.shape_cast %2 : vector<1x1x16x16xf32> to vector<16x16xf32>
    %c2 = arith.constant 2 : index
    %c2_5 = arith.constant 2 : index
    %4 = vector.load %arg8[%c2, %c2_5] : memref<20x80xf32, #tpu.memory_space<vmem>>, vector<16x16xf32>
    tpu.vector_store %arg8[%c2, %c2_5], %3 {strides = array<i32>} : memref<20x80xf32, #tpu.memory_space<vmem>>, vector<16x16xf32>,
    %c0_6 = arith.constant 0 : index
    %c1 = arith.constant 1 : index
    %c0_7 = arith.constant 0 : index
    %c0_8 = arith.constant 0 : index
    %5 = vector.load %arg1[%c0_6, %c1, %c0_7, %c0_8] : memref<1x2x16x16xf32, #tpu.memory_space<vmem>>, vector<1x1x16x16xf32>
    %6 = vector.shape_cast %5 : vector<1x1x16x16xf32> to vector<16x16xf32>
    %c2_9 = arith.constant 2 : index
    %c22 = arith.constant 22 : index
    %7 = vector.load %arg8[%c2_9, %c22] : memref<20x80xf32, #tpu.memory_space<vmem>>, vector<16x16xf32>
    tpu.vector_store %arg8[%c2_9, %c22], %6 {strides = array<i32>} : memref<20x80xf32, #tpu.memory_space<vmem>>, vector<16x16xf32>,
    %c0_10 = arith.constant 0 : index
    %c0_11 = arith.constant 0 : index
    %c0_12 = arith.constant 0 : index
    %c0_13 = arith.constant 0 : index
    %8 = vector.load %arg2[%c0_10, %c0_11, %c0_12, %c0_13] : memref<1x2x16x16xf32, #tpu.memory_space<vmem>>, vector<1x1x16x16xf32>
    %9 = vector.shape_cast %8 : vector<1x1x16x16xf32> to vector<16x16xf32>
    %c2_14 = arith.constant 2 : index
    %c42 = arith.constant 42 : index
    %10 = vector.load %arg8[%c2_14, %c42] : memref<20x80xf32, #tpu.memory_space<vmem>>, vector<16x16xf32>
    tpu.vector_store %arg8[%c2_14, %c42], %9 {strides = array<i32>} : memref<20x80xf32, #tpu.memory_space<vmem>>, vector<16x16xf32>,
    %c0_15 = arith.constant 0 : index
    %c1_16 = arith.constant 1 : index
    %c0_17 = arith.constant 0 : index
    %c0_18 = arith.constant 0 : index
    %11 = vector.load %arg2[%c0_15, %c1_16, %c0_17, %c0_18] : memref<1x2x16x16xf32, #tpu.memory_space<vmem>>, vector<1x1x16x16xf32>
    %12 = vector.shape_cast %11 : vector<1x1x16x16xf32> to vector<16x16xf32>
    %c2_19 = arith.constant 2 : index
    %c62 = arith.constant 62 : index
    %13 = vector.load %arg8[%c2_19, %c62] : memref<20x80xf32, #tpu.memory_space<vmem>>, vector<16x16xf32>
    tpu.vector_store %arg8[%c2_19, %c62], %12 {strides = array<i32>} : memref<20x80xf32, #tpu.memory_space<vmem>>, vector<16x16xf32>,
    %c0_20 = arith.constant 0 : index
    %c0_21 = arith.constant 0 : index
    %14 = vector.load %arg8[%c0_20, %c0_21] : memref<20x80xf32, #tpu.memory_space<vmem>>, vector<18x80xf32>
    %c0_22 = arith.constant 0 : index
    %c0_23 = arith.constant 0 : index
    %15 = vector.load %arg9[%c0_22, %c0_23] : memref<18x240xf32, #tpu.memory_space<vmem>>, vector<18x80xf32>
    tpu.vector_store %arg9[%c0_22, %c0_23], %14 {strides = array<i32>} : memref<18x240xf32, #tpu.memory_space<vmem>>, vector<18x80xf32>,
    %c1_24 = arith.constant 1 : index
    %c0_25 = arith.constant 0 : index
    %16 = vector.load %arg8[%c1_24, %c0_25] : memref<20x80xf32, #tpu.memory_space<vmem>>, vector<18x80xf32>
    %c0_26 = arith.constant 0 : index
    %c80 = arith.constant 80 : index
    %17 = vector.load %arg9[%c0_26, %c80] : memref<18x240xf32, #tpu.memory_space<vmem>>, vector<18x80xf32>
    tpu.vector_store %arg9[%c0_26, %c80], %16 {strides = array<i32>} : memref<18x240xf32, #tpu.memory_space<vmem>>, vector<18x80xf32>,
    %c2_27 = arith.constant 2 : index
    %c0_28 = arith.constant 0 : index
    %18 = vector.load %arg8[%c2_27, %c0_28] : memref<20x80xf32, #tpu.memory_space<vmem>>, vector<18x80xf32>
    %c0_29 = arith.constant 0 : index
    %c160 = arith.constant 160 : index
    %19 = vector.load %arg9[%c0_29, %c160] : memref<18x240xf32, #tpu.memory_space<vmem>>, vector<18x80xf32>
    tpu.vector_store %arg9[%c0_29, %c160], %18 {strides = array<i32>} : memref<18x240xf32, #tpu.memory_space<vmem>>, vector<18x80xf32>,
    %c0_30 = arith.constant 0 : index
    %c0_31 = arith.constant 0 : index
    %20 = vector.load %arg9[%c0_30, %c0_31] : memref<18x240xf32, #tpu.memory_space<vmem>>, vector<18x240xf32>
    %c0_32 = arith.constant 0 : index
    %c0_33 = arith.constant 0 : index
    %21 = vector.load %arg3[%c0_32, %c0_33] : memref<240x176xf32, #tpu.memory_space<vmem>>, vector<240x176xf32>
    %cst_34 = arith.constant dense<0.000000e+00> : vector<18x176xf32>
    %22 = tpu.matmul %20, %21, %cst_34 {dimension_numbers = #tpu.dot_dimension_numbers<[1], [0], [0], [1], [0, 0, 1, 1], [], []>} : vector<18x240xf32>, vector<240x176xf32>, vector<18x176xf32> -> vector<18x176xf32>
    %c0_35 = arith.constant 0 : index
    %c0_36 = arith.constant 0 : index
    %23 = vector.load %arg4[%c0_35, %c0_36] : memref<1x176xf32, #tpu.memory_space<vmem>>, vector<1x176xf32>
    %24 = vector.broadcast %23 : vector<1x176xf32> to vector<18x176xf32>
    %25 = arith.addf %22, %24 : vector<18x176xf32>
    %cst_37 = arith.constant 0.000000e+00 : f32
    %26 = vector.broadcast %cst_37 : f32 to vector<18x176xf32>
    %27 = arith.maximumf %25, %26 : vector<18x176xf32>
    %cst_38 = arith.constant 0.000000e+00 : f32
    %28 = vector.broadcast %cst_38 : f32 to vector<22x176xf32>
    %c0_39 = arith.constant 0 : index
    %c0_40 = arith.constant 0 : index
    %29 = vector.load %arg10[%c0_39, %c0_40] : memref<22x176xf32, #tpu.memory_space<vmem>>, vector<22x176xf32>
    tpu.vector_store %arg10[%c0_39, %c0_40], %28 {strides = array<i32>} : memref<22x176xf32, #tpu.memory_space<vmem>>, vector<22x176xf32>,
    %c2_41 = arith.constant 2 : index
    %c0_42 = arith.constant 0 : index
    %30 = vector.load %arg10[%c2_41, %c0_42] : memref<22x176xf32, #tpu.memory_space<vmem>>, vector<18x176xf32>
    tpu.vector_store %arg10[%c2_41, %c0_42], %27 {strides = array<i32>} : memref<22x176xf32, #tpu.memory_space<vmem>>, vector<18x176xf32>,
    %c0_43 = arith.constant 0 : index
    %c0_44 = arith.constant 0 : index
    %31 = vector.load %arg10[%c0_43, %c0_44] : memref<22x176xf32, #tpu.memory_space<vmem>>, vector<20x176xf32>
    %c0_45 = arith.constant 0 : index
    %c0_46 = arith.constant 0 : index
    %32 = vector.load %arg11[%c0_45, %c0_46] : memref<20x528xf32, #tpu.memory_space<vmem>>, vector<20x176xf32>
    tpu.vector_store %arg11[%c0_45, %c0_46], %31 {strides = array<i32>} : memref<20x528xf32, #tpu.memory_space<vmem>>, vector<20x176xf32>,
    %c1_47 = arith.constant 1 : index
    %c0_48 = arith.constant 0 : index
    %33 = vector.load %arg10[%c1_47, %c0_48] : memref<22x176xf32, #tpu.memory_space<vmem>>, vector<20x176xf32>
    %c0_49 = arith.constant 0 : index
    %c176 = arith.constant 176 : index
    %34 = vector.load %arg11[%c0_49, %c176] : memref<20x528xf32, #tpu.memory_space<vmem>>, vector<20x176xf32>
    tpu.vector_store %arg11[%c0_49, %c176], %33 {strides = array<i32>} : memref<20x528xf32, #tpu.memory_space<vmem>>, vector<20x176xf32>,
    %c2_50 = arith.constant 2 : index
    %c0_51 = arith.constant 0 : index
    %35 = vector.load %arg10[%c2_50, %c0_51] : memref<22x176xf32, #tpu.memory_space<vmem>>, vector<20x176xf32>
    %c0_52 = arith.constant 0 : index
    %c352 = arith.constant 352 : index
    %36 = vector.load %arg11[%c0_52, %c352] : memref<20x528xf32, #tpu.memory_space<vmem>>, vector<20x176xf32>
    tpu.vector_store %arg11[%c0_52, %c352], %35 {strides = array<i32>} : memref<20x528xf32, #tpu.memory_space<vmem>>, vector<20x176xf32>,
    %c0_53 = arith.constant 0 : index
    %c0_54 = arith.constant 0 : index
    %37 = vector.load %arg11[%c0_53, %c0_54] : memref<20x528xf32, #tpu.memory_space<vmem>>, vector<20x528xf32>
    %c0_55 = arith.constant 0 : index
    %c0_56 = arith.constant 0 : index
    %38 = vector.load %arg5[%c0_55, %c0_56] : memref<528x160xf32, #tpu.memory_space<vmem>>, vector<528x160xf32>
    %cst_57 = arith.constant dense<0.000000e+00> : vector<20x160xf32>
    %39 = tpu.matmul %37, %38, %cst_57 {dimension_numbers = #tpu.dot_dimension_numbers<[1], [0], [0], [1], [0, 0, 1, 1], [], []>} : vector<20x528xf32>, vector<528x160xf32>, vector<20x160xf32> -> vector<20x160xf32>
    %c0_58 = arith.constant 0 : index
    %c0_59 = arith.constant 0 : index
    %40 = vector.load %arg6[%c0_58, %c0_59] : memref<1x160xf32, #tpu.memory_space<vmem>>, vector<1x160xf32>
    %41 = vector.broadcast %40 : vector<1x160xf32> to vector<20x160xf32>
    %42 = arith.addf %39, %41 : vector<20x160xf32>
    %c0_60 = arith.constant 0 : index
    %c0_61 = arith.constant 0 : index
    %c0_62 = arith.constant 0 : index
    %43 = vector.load %arg7[%c0_60, %c0_61, %c0_62] : memref<1x20x160xf32, #tpu.memory_space<vmem>>, vector<1x20x160xf32>
    %44 = vector.shape_cast %43 : vector<1x20x160xf32> to vector<20x160xf32>
    %45 = vector.shape_cast %42 : vector<20x160xf32> to vector<1x20x160xf32>
    tpu.vector_store %arg7[%c0_60, %c0_61, %c0_62], %45 {strides = array<i32>} : memref<1x20x160xf32, #tpu.memory_space<vmem>>, vector<1x20x160xf32>,
    return
  }
  func.func @transform_0(%arg0: i32) -> (i32, i32, i32, i32) {
    %c0_i32 = arith.constant 0 : i32
    %c0_i32_0 = arith.constant 0 : i32
    %c0_i32_1 = arith.constant 0 : i32
    %c0_i32_2 = arith.constant 0 : i32
    return %arg0, %c0_i32, %c0_i32_0, %c0_i32_1 : i32, i32, i32, i32
  }
  func.func @transform_1(%arg0: i32) -> (i32, i32, i32, i32) {
    %c0_i32 = arith.constant 0 : i32
    %c0_i32_0 = arith.constant 0 : i32
    %c0_i32_1 = arith.constant 0 : i32
    %c0_i32_2 = arith.constant 0 : i32
    return %arg0, %c0_i32, %c0_i32_0, %c0_i32_1 : i32, i32, i32, i32
  }
  func.func @transform_2(%arg0: i32) -> (i32, i32) {
    %c0_i32 = arith.constant 0 : i32
    %c0_i32_0 = arith.constant 0 : i32
    %c0_i32_1 = arith.constant 0 : i32
    return %c0_i32, %c0_i32_0 : i32, i32
  }
  func.func @transform_3(%arg0: i32) -> (i32, i32) {
    %c0_i32 = arith.constant 0 : i32
    %c0_i32_0 = arith.constant 0 : i32
    %c0_i32_1 = arith.constant 0 : i32
    return %c0_i32, %c0_i32_0 : i32, i32
  }
  func.func @transform_4(%arg0: i32) -> (i32, i32) {
    %c0_i32 = arith.constant 0 : i32
    %c0_i32_0 = arith.constant 0 : i32
    %c0_i32_1 = arith.constant 0 : i32
    return %c0_i32, %c0_i32_0 : i32, i32
  }
  func.func @transform_5(%arg0: i32) -> (i32, i32) {
    %c0_i32 = arith.constant 0 : i32
    %c0_i32_0 = arith.constant 0 : i32
    %c0_i32_1 = arith.constant 0 : i32
    return %c0_i32, %c0_i32_0 : i32, i32
  }
  func.func @transform_6(%arg0: i32) -> (i32, i32, i32) {
    %c0_i32 = arith.constant 0 : i32
    %c0_i32_0 = arith.constant 0 : i32
    %c0_i32_1 = arith.constant 0 : i32
    return %arg0, %c0_i32, %c0_i32_0 : i32, i32, i32
  }
}

</mosaic_0001>

<llo_original>
// kernel: double_conv_up_forward.1
$region0: #{double_conv_up_forward.1}
  #allocation0 [shape = 'u32[]', space=smem, size = 0x4, offset = 0x4, fixed_abs, tag = 'smem constant byte address 0x4 - core index']
  #allocation1 [shape = 'u32[144,128]{1,0:T(1,128)}', space=vmem, size = 0x12000, scoped, tag = 'internal scratch']
  #allocation2 [shape = 'f32[20,80]{1,0:T(8,128)}', space=vmem, size = 0x3000, scoped, tag = 'scratch operand']
  #allocation3 [shape = 'f32[18,240]{1,0:T(8,128)}', space=vmem, size = 0x6000, scoped, tag = 'scratch operand']
  #allocation4 [shape = 'f32[22,176]{1,0:T(8,128)}', space=vmem, size = 0x6000, scoped, tag = 'scratch operand']
  #allocation5 [shape = 'f32[20,528]{1,0:T(8,128)}', space=vmem, size = 0xf000, scoped, tag = 'scratch operand']
  %s0 = inlined_call_operand.vmem [shape: f32[2,2,16,16], index: 0, kind: input, shape index: {}]
  %s1 = inlined_call_operand.vmem [shape: f32[2,2,16,16], index: 1, kind: input, shape index: {}]
  %s2 = inlined_call_operand.vmem [shape: f32[240,176], index: 2, kind: input, shape index: {}]
  %s3 = inlined_call_operand.vmem [shape: f32[1,176], index: 3, kind: input, shape index: {}]
  %s4 = inlined_call_operand.vmem [shape: f32[528,160], index: 4, kind: input, shape index: {}]
  %s5 = inlined_call_operand.vmem [shape: f32[1,160], index: 5, kind: input, shape index: {}]
  %s6 = inlined_call_operand.vmem [shape: f32[2,20,160], index: 6, kind: output, shape index: {}]
  %s7 = sld [smem:[#allocation0]]
  $region57: #{double_conv_up_forward.1} parent=0
    _
  %s9 = ssub.s32 1, %s7
  %s10 = scalar_select 0, %s9, %s7
  loop: start=0, step=1, limit=4
  $region2: #{double_conv_up_forward.1} parent=0 // loop_pre_header
    _
  $region3: #{double_conv_up_forward.1} parent=0 // loop_header
    %s12 = sphi 0, %s16
    %p13 = scmp.ge.s32.totalorder %s12, 4
    %s22 = sphi 0, %s24
    %s25 = sphi 0, %s22
    %s26 = sphi 0, %s25
    %s42 = sphi 0, %s26
    %s48 = sphi 0, %s50
    %s51 = sphi 0, %s48
    %s52 = sphi 0, %s51
    %s68 = sphi 0, %s52
    %s72 = sphi 0, %s72
    %s74 = sphi 0, %s72
    %s75 = sphi 0, %s74
    %s89 = sphi 0, %s75
    %s93 = sphi 0, %s93
    %s95 = sphi 0, %s93
    %s96 = sphi 0, %s95
    %s110 = sphi 0, %s96
    %s114 = sphi 0, %s114
    %s116 = sphi 0, %s114
    %s117 = sphi 0, %s116
    %s131 = sphi 0, %s117
    %s135 = sphi 0, %s135
    %s137 = sphi 0, %s135
    %s138 = sphi 0, %s137
    %s152 = sphi 0, %s138
    %s158 = sphi 0, %s160
    %s161 = sphi 0, %s158
    %s162 = sphi 0, %s161
    %s178 = sphi 0, %s162
  $region4: #{double_conv_up_forward.1} parent=0 // loop_header_branch
    %15 = sbr.rel (%p13) target = $region8
  $region5: #{double_conv_up_forward.1} parent=0 // loop_body
    %s17 = ssub.s32 %s12, 1
    %s18 = ssub.s32 %s12, 2
    %s19 = sadd.s32 %s12, 1
    %s20 = ssub.s32 %s12, %s19
    %p21 = scmp.eq.s32.totalorder %s20, 0
    %s23 = sadd.s32 %s22, 1
    %s24 = scalar_select %p21, %s22, %s23
    %p27 = pneg %p21
    %p28 = scmp.eq.s32.totalorder %s12, 1
    %p29 = por %p27, %p28
    %p30 = scmp.ne.s32.totalorder %s22, %s25
    %p31 = scmp.eq.s32.totalorder %s12, 0
    %p32 = por %p30, %p31
    %p33 = scmp.ne.s32.totalorder %s22, %s25
    %p34 = scmp.eq.s32.totalorder %s17, 1
    %p35 = por %p33, %p34
    %p36 = scmp.ne.s32.totalorder %s25, %s26
    %p37 = scmp.eq.s32.totalorder %s17, 0
    %p38 = por %p36, %p37
    %p39 = scmp.ne.s32.totalorder %s25, %s26
    %p40 = scmp.eq.s32.totalorder %s18, 1
    %p41 = por %p39, %p40
    %p43 = scmp.ne.s32.totalorder %s26, %s42
    %p44 = scmp.eq.s32.totalorder %s18, 0
    %p45 = por %p43, %p44
    %s46 = ssub.s32 %s12, %s19
    %p47 = scmp.eq.s32.totalorder %s46, 0
    %s49 = sadd.s32 %s48, 1
    %s50 = scalar_select %p47, %s48, %s49
    %p53 = pneg %p47
    %p54 = scmp.eq.s32.totalorder %s12, 1
    %p55 = por %p53, %p54
    %p56 = scmp.ne.s32.totalorder %s48, %s51
    %p57 = scmp.eq.s32.totalorder %s12, 0
    %p58 = por %p56, %p57
    %p59 = scmp.ne.s32.totalorder %s48, %s51
    %p60 = scmp.eq.s32.totalorder %s17, 1
    %p61 = por %p59, %p60
    %p62 = scmp.ne.s32.totalorder %s51, %s52
    %p63 = scmp.eq.s32.totalorder %s17, 0
    %p64 = por %p62, %p63
    %p65 = scmp.ne.s32.totalorder %s51, %s52
    %p66 = scmp.eq.s32.totalorder %s18, 1
    %p67 = por %p65, %p66
    %p69 = scmp.ne.s32.totalorder %s52, %s68
    %p70 = scmp.eq.s32.totalorder %s18, 0
    %p71 = por %p69, %p70
    %s73 = sadd.s32 %s72, 1
    %p76 = scmp.eq.s32.totalorder %s12, 1
    %p77 = scmp.ne.s32.totalorder %s72, %s74
    %p78 = scmp.eq.s32.totalorder %s12, 0
    %p79 = por %p77, %p78
    %p80 = scmp.ne.s32.totalorder %s72, %s74
    %p81 = scmp.eq.s32.totalorder %s17, 1
    %p82 = por %p80, %p81
    %p83 = scmp.ne.s32.totalorder %s74, %s75
    %p84 = scmp.eq.s32.totalorder %s17, 0
    %p85 = por %p83, %p84
    %p86 = scmp.ne.s32.totalorder %s74, %s75
    %p87 = scmp.eq.s32.totalorder %s18, 1
    %p88 = por %p86, %p87
    %p90 = scmp.ne.s32.totalorder %s75, %s89
    %p91 = scmp.eq.s32.totalorder %s18, 0
    %p92 = por %p90, %p91
    %s94 = sadd.s32 %s93, 1
    %p97 = scmp.eq.s32.totalorder %s12, 1
    %p98 = scmp.ne.s32.totalorder %s93, %s95
    %p99 = scmp.eq.s32.totalorder %s12, 0
    %p100 = por %p98, %p99
    %p101 = scmp.ne.s32.totalorder %s93, %s95
    %p102 = scmp.eq.s32.totalorder %s17, 1
    %p103 = por %p101, %p102
    %p104 = scmp.ne.s32.totalorder %s95, %s96
    %p105 = scmp.eq.s32.totalorder %s17, 0
    %p106 = por %p104, %p105
    %p107 = scmp.ne.s32.totalorder %s95, %s96
    %p108 = scmp.eq.s32.totalorder %s18, 1
    %p109 = por %p107, %p108
    %p111 = scmp.ne.s32.totalorder %s96, %s110
    %p112 = scmp.eq.s32.totalorder %s18, 0
    %p113 = por %p111, %p112
    %s115 = sadd.s32 %s114, 1
    %p118 = scmp.eq.s32.totalorder %s12, 1
    %p119 = scmp.ne.s32.totalorder %s114, %s116
    %p120 = scmp.eq.s32.totalorder %s12, 0
    %p121 = por %p119, %p120
    %p122 = scmp.ne.s32.totalorder %s114, %s116
    %p123 = scmp.eq.s32.totalorder %s17, 1
    %p124 = por %p122, %p123
    %p125 = scmp.ne.s32.totalorder %s116, %s117
    %p126 = scmp.eq.s32.totalorder %s17, 0
    %p127 = por %p125, %p126
    %p128 = scmp.ne.s32.totalorder %s116, %s117
    %p129 = scmp.eq.s32.totalorder %s18, 1
    %p130 = por %p128, %p129
    %p132 = scmp.ne.s32.totalorder %s117, %s131
    %p133 = scmp.eq.s32.totalorder %s18, 0
    %p134 = por %p132, %p133
    %s136 = sadd.s32 %s135, 1
    %p139 = scmp.eq.s32.totalorder %s12, 1
    %p140 = scmp.ne.s32.totalorder %s135, %s137
    %p141 = scmp.eq.s32.totalorder %s12, 0
    %p142 = por %p140, %p141
    %p143 = scmp.ne.s32.totalorder %s135, %s137
    %p144 = scmp.eq.s32.totalorder %s17, 1
    %p145 = por %p143, %p144
    %p146 = scmp.ne.s32.totalorder %s137, %s138
    %p147 = scmp.eq.s32.totalorder %s17, 0
    %p148 = por %p146, %p147
    %p149 = scmp.ne.s32.totalorder %s137, %s138
    %p150 = scmp.eq.s32.totalorder %s18, 1
    %p151 = por %p149, %p150
    %p153 = scmp.ne.s32.totalorder %s138, %s152
    %p154 = scmp.eq.s32.totalorder %s18, 0
    %p155 = por %p153, %p154
    %s156 = ssub.s32 %s12, %s19
    %p157 = scmp.eq.s32.totalorder %s156, 0
    %s159 = sadd.s32 %s158, 1
    %s160 = scalar_select %p157, %s158, %s159
    %p163 = pneg %p157
    %p164 = scmp.eq.s32.totalorder %s12, 1
    %p165 = por %p163, %p164
    %p166 = scmp.ne.s32.totalorder %s158, %s161
    %p167 = scmp.eq.s32.totalorder %s12, 0
    %p168 = por %p166, %p167
    %p169 = scmp.ne.s32.totalorder %s158, %s161
    %p170 = scmp.eq.s32.totalorder %s17, 1
    %p171 = por %p169, %p170
    %p172 = scmp.ne.s32.totalorder %s161, %s162
    %p173 = scmp.eq.s32.totalorder %s17, 0
    %p174 = por %p172, %p173
    %p175 = scmp.ne.s32.totalorder %s161, %s162
    %p176 = scmp.eq.s32.totalorder %s18, 1
    %p177 = por %p175, %p176
    %p179 = scmp.ne.s32.totalorder %s162, %s178
    %p180 = scmp.eq.s32.totalorder %s18, 0
    %p181 = por %p179, %p180
    %p182 = scmp.le.s32.totalorder 1, %s12
    %p183 = scmp.lt.s32.totalorder %s12, 3
    %p184 = pnand %p182, %p183
    %p185 = pneg %p184
    // Predicated region
    $region9: #{double_conv_up_forward.1} parent=5 // pred_check
      _
    $region10: #{double_conv_up_forward.1} parent=5 // pred_check_branch
      %187 = sbr.rel (%p184) target = $region12
    $region11: #{double_conv_up_forward.1} parent=5 // pred_region
      %s188 = ssub.s32 %s12, 1
      // Predicated region
      $region13: #{double_conv_up_forward.1} parent=11 // pred_check
        %p189 = pneg %p85
      $region14: #{double_conv_up_forward.1} parent=11 // pred_check_branch
        %191 = sbr.rel (%p189) target = $region16
      $region15: #{double_conv_up_forward.1} parent=11 // pred_region
        _
      $region16: #{double_conv_up_forward.1} parent=11 // pred_fallthru
        _
      // Predicated region
      $region17: #{double_conv_up_forward.1} parent=11 // pred_check
        %p192 = pneg %p106
      $region18: #{double_conv_up_forward.1} parent=11 // pred_check_branch
        %194 = sbr.rel (%p192) target = $region20
      $region19: #{double_conv_up_forward.1} parent=11 // pred_region
        _
      $region20: #{double_conv_up_forward.1} parent=11 // pred_fallthru
        _
      // Predicated region
      $region21: #{double_conv_up_forward.1} parent=11 // pred_check
        %p195 = pneg %p127
      $region22: #{double_conv_up_forward.1} parent=11 // pred_check_branch
        %197 = sbr.rel (%p195) target = $region24
      $region23: #{double_conv_up_forward.1} parent=11 // pred_region
        _
      $region24: #{double_conv_up_forward.1} parent=11 // pred_fallthru
        _
      // Predicated region
      $region25: #{double_conv_up_forward.1} parent=11 // pred_check
        %p198 = pneg %p148
      $region26: #{double_conv_up_forward.1} parent=11 // pred_check_branch
        %200 = sbr.rel (%p198) target = $region28
      $region27: #{double_conv_up_forward.1} parent=11 // pred_region
        _
      $region28: #{double_conv_up_forward.1} parent=11 // pred_fallthru
        _
    $region12: #{double_conv_up_forward.1} parent=5 // pred_fallthru
      _
    %p201 = scmp.lt.s32.totalorder %s12, 2
    // Predicated region
    $region29: #{double_conv_up_forward.1} parent=5 // pred_check
      %p202 = pneg %p201
    $region30: #{double_conv_up_forward.1} parent=5 // pred_check_branch
      %204 = sbr.rel (%p202) target = $region32
    $region31: #{double_conv_up_forward.1} parent=5 // pred_region
      // Predicated region
      $region33: #{double_conv_up_forward.1} parent=31 // pred_check
        %p205 = pneg %p32
      $region34: #{double_conv_up_forward.1} parent=31 // pred_check_branch
        %207 = sbr.rel (%p205) target = $region36
      $region35: #{double_conv_up_forward.1} parent=31 // pred_region
        %p208 = scmp.lt.s32.totalorder %s12, 1
        %s209 = scalar_select %p208, %s12, 1
        %s210 = smul.addr %s209, 4
        %s211 = smul.addr %s210, 8
        %s212 = scalar_lea.vmem %s0, %s211
      $region36: #{double_conv_up_forward.1} parent=31 // pred_fallthru
        _
      // Predicated region
      $region37: #{double_conv_up_forward.1} parent=31 // pred_check
        %p213 = pneg %p58
      $region38: #{double_conv_up_forward.1} parent=31 // pred_check_branch
        %215 = sbr.rel (%p213) target = $region40
      $region39: #{double_conv_up_forward.1} parent=31 // pred_region
        %p216 = scmp.lt.s32.totalorder %s12, 1
        %s217 = scalar_select %p216, %s12, 1
        %s218 = smul.addr %s217, 4
        %s219 = smul.addr %s218, 8
        %s220 = scalar_lea.vmem %s1, %s219
      $region40: #{double_conv_up_forward.1} parent=31 // pred_fallthru
        _
    $region32: #{double_conv_up_forward.1} parent=5 // pred_fallthru
      _
    %p221 = scmp.le.s32.totalorder 1, %s12
    %p222 = scmp.lt.s32.totalorder %s12, 3
    %p223 = pnand %p221, %p222
    %p224 = pneg %p223
    // Predicated region
    $region41: #{double_conv_up_forward.1} parent=5 // pred_check
      _
    $region42: #{double_conv_up_forward.1} parent=5 // pred_check_branch
      %226 = sbr.rel (%p223) target = $region44
    $region43: #{double_conv_up_forward.1} parent=5 // pred_region
      %s227 = ssub.s32 %s12, 1
      %p228 = scmp.lt.s32.totalorder %s17, 1
      %s229 = scalar_select %p228, %s17, 1
      %s230 = smul.addr %s229, 4
      %s231 = smul.addr %s230, 8
      %s232 = scalar_lea.vmem %s0, %s231
      %p233 = pneg %p38
      %p234 = pneg %p35
      %p235 = scmp.lt.s32.totalorder %s17, 1
      %s236 = scalar_select %p235, %s17, 1
      %s237 = smul.addr %s236, 4
      %s238 = smul.addr %s237, 8
      %s239 = scalar_lea.vmem %s1, %s238
      %p240 = pneg %p64
      %p241 = pneg %p61
      %p242 = pneg %p85
      %p243 = pneg %p82
      %p244 = pneg %p106
      %p245 = pneg %p103
      %p246 = pneg %p127
      %p247 = pneg %p124
      %p248 = pneg %p148
      %p249 = pneg %p145
      %p250 = pneg %p174
      %p251 = pneg %p171
      %p252 = scmp.lt.s32.totalorder %s17, 1
      %s253 = scalar_select %p252, %s17, 1
      %s254 = smul.addr %s253, 6
      %s255 = smul.addr %s254, 8
      %s256 = scalar_lea.vmem %s6, %s255
      %p257 = scmp.lt.s32.totalorder %s17, 1
      %s258 = scalar_select %p257, %s17, 1
      %s259 = smul.addr %s258, 4
      %s260 = smul.addr %s259, 8
      %s261 = scalar_lea.vmem %s0, %s260
      %p262 = scmp.lt.s32.totalorder %s17, 1
      %s263 = scalar_select %p262, %s17, 1
      %s264 = smul.addr %s263, 4
      %s265 = smul.addr %s264, 8
      %s266 = scalar_lea.vmem %s1, %s265
      %p267 = scmp.lt.s32.totalorder %s17, 1
      %s268 = scalar_select %p267, %s17, 1
      %s269 = smul.addr %s268, 6
      %s270 = smul.addr %s269, 8
      %s271 = scalar_lea.vmem %s6, %s270
      %vm272 = vcmask 654336
      %273 = vst.msk [vmem:[#allocation2] sm:$0xff] %vm272, 0.0
      %274 = vst.msk [vmem:[#allocation2 + $0x8] sm:$0xff] %vm272, 0.0
      %vm275 = vcmask 650240
      %276 = vst.msk [vmem:[#allocation2 + $0x10] sm:$0xf] %vm275, 0.0
      %v277 = vld [vmem:[%s261] sm:$0xff]
      %v278 = vld [vmem:[%s261 + $0x8] sm:$0xff]
      %281 = vrot.lane.b32.xlu0 %v277, 2
      %v282 = vpop.permute.xlu0 %281
      %283 = vrot.lane.b32.xlu0 %v278, 2
      %v284 = vpop.permute.xlu0 %283
      %vm287 = vcmask 146448
      %288 = vst.msk [vmem:[#allocation2 + $0x2] sm:$0xff] %vm287, %v282
      %289 = vst.msk [vmem:[#allocation2 + $0xa] sm:$0xff] %vm287, %v284
      %s290 = scalar_lea.vmem %s261, 16
      %v291 = vld [vmem:[%s290] sm:$0xff]
      %v292 = vld [vmem:[%s290 + $0x8] sm:$0xff]
      %295 = vrot.lane.b32.xlu0 %v291, 22
      %v296 = vpop.permute.xlu0 %295
      %297 = vrot.lane.b32.xlu0 %v292, 22
      %v298 = vpop.permute.xlu0 %297
      %vm301 = vcmask 310448
      %302 = vst.msk [vmem:[#allocation2 + $0x2] sm:$0xff] %vm301, %v296
      %303 = vst.msk [vmem:[#allocation2 + $0xa] sm:$0xff] %vm301, %v298
      %v304 = vld [vmem:[%s266] sm:$0xff]
      %v305 = vld [vmem:[%s266 + $0x8] sm:$0xff]
      %308 = vrot.lane.b32.xlu0 %v304, 42
      %v309 = vpop.permute.xlu0 %308
      %310 = vrot.lane.b32.xlu0 %v305, 42
      %v311 = vpop.permute.xlu0 %310
      %vm314 = vcmask 474448
      %315 = vst.msk [vmem:[#allocation2 + $0x2] sm:$0xff] %vm314, %v309
      %316 = vst.msk [vmem:[#allocation2 + $0xa] sm:$0xff] %vm314, %v311
      %s317 = scalar_lea.vmem %s266, 16
      %v318 = vld [vmem:[%s317] sm:$0xff]
      %v319 = vld [vmem:[%s317 + $0x8] sm:$0xff]
      %322 = vrot.lane.b32.xlu0 %v318, 62
      %v323 = vpop.permute.xlu0 %322
      %324 = vrot.lane.b32.xlu0 %v319, 62
      %v325 = vpop.permute.xlu0 %324
      %vm328 = vcmask 638448
      %329 = vst.msk [vmem:[#allocation2 + $0x2] sm:$0xff] %vm328, %v323
      %330 = vst.msk [vmem:[#allocation2 + $0xa] sm:$0xff] %vm328, %v325
      %v331 = vld [vmem:[#allocation2] sm:$0xff]
      %v332 = vld [vmem:[#allocation2 + $0x8] sm:$0xff]
      %v333 = vld [vmem:[#allocation2 + $0x10] sm:$0x3]
      %334 = vst.msk [vmem:[#allocation3] sm:$0xff] %vm272, %v331
      %335 = vst.msk [vmem:[#allocation3 + $0x10] sm:$0xff] %vm272, %v332
      %vm336 = vcmask 648192
      %337 = vst.msk [vmem:[#allocation3 + $0x20] sm:$0x3] %vm336, %v333
      %v338 = vld [vmem:[#allocation2 + $0x1] sm:$0xff]
      %v339 = vld [vmem:[#allocation2 + $0x9] sm:$0xff]
      %v340 = vld [vmem:[#allocation2 + $0x11] sm:$0x3]
      %344 = vrot.lane.b32.xlu0 %v338, 80
      %v345 = vpop.permute.xlu0 %344
      %346 = vrot.lane.b32.xlu0 %v339, 80
      %v347 = vpop.permute.xlu0 %346
      %348 = vrot.lane.b32.xlu0 %v340, 80
      %v349 = vpop.permute.xlu0 %348
      %vm353 = vcmask 1048192
      %354 = vst.msk [vmem:[#allocation3] sm:$0xff] %vm353, %v345
      %vm355 = vcmask 261120
      %356 = vst.msk [vmem:[#allocation3 + $0x8] sm:$0xff] %vm355, %v345
      %357 = vst.msk [vmem:[#allocation3 + $0x10] sm:$0xff] %vm353, %v347
      %358 = vst.msk [vmem:[#allocation3 + $0x18] sm:$0xff] %vm355, %v347
      %vm359 = vcmask 1042048
      %360 = vst.msk [vmem:[#allocation3 + $0x20] sm:$0x3] %vm359, %v349
      %vm361 = vcmask 254976
      %362 = vst.msk [vmem:[#allocation3 + $0x28] sm:$0x3] %vm361, %v349
      %v363 = vld [vmem:[#allocation2 + $0x2] sm:$0xff]
      %v364 = vld [vmem:[#allocation2 + $0xa] sm:$0xff]
      %v365 = vld [vmem:[#allocation2 + $0x12] sm:$0x3]
      %369 = vrot.lane.b32.xlu0 %v363, 32
      %v370 = vpop.permute.xlu0 %369
      %371 = vrot.lane.b32.xlu0 %v364, 32
      %v372 = vpop.permute.xlu0 %371
      %373 = vrot.lane.b32.xlu0 %v365, 32
      %v374 = vpop.permute.xlu0 %373
      %vm378 = vcmask 916736
      %379 = vst.msk [vmem:[#allocation3 + $0x8] sm:$0xff] %vm378, %v370
      %380 = vst.msk [vmem:[#allocation3 + $0x18] sm:$0xff] %vm378, %v372
      %vm381 = vcmask 910592
      %382 = vst.msk [vmem:[#allocation3 + $0x28] sm:$0x3] %vm381, %v374
      %v383 = vld [vmem:[#allocation3] sm:$0xff]
      %v384 = vld [vmem:[#allocation3 + $0x8] sm:$0xff]
      %v385 = vld [vmem:[#allocation3 + $0x10] sm:$0xff]
      %v386 = vld [vmem:[#allocation3 + $0x18] sm:$0xff]
      %v387 = vld [vmem:[#allocation3 + $0x20] sm:$0x3]
      %v388 = vld [vmem:[#allocation3 + $0x28] sm:$0x3]
      %v389 = vld [vmem:[%s2] sm:$0xff]
      %v390 = vld [vmem:[%s2 + $0x8] sm:$0xff]
      %v391 = vld [vmem:[%s2 + $0x10] sm:$0xff]
      %v392 = vld [vmem:[%s2 + $0x18] sm:$0xff]
      %v393 = vld [vmem:[%s2 + $0x20] sm:$0xff]
      %v394 = vld [vmem:[%s2 + $0x28] sm:$0xff]
      %v395 = vld [vmem:[%s2 + $0x30] sm:$0xff]
      %v396 = vld [vmem:[%s2 + $0x38] sm:$0xff]
      %v397 = vld [vmem:[%s2 + $0x40] sm:$0xff]
      %v398 = vld [vmem:[%s2 + $0x48] sm:$0xff]
      %v399 = vld [vmem:[%s2 + $0x50] sm:$0xff]
      %v400 = vld [vmem:[%s2 + $0x58] sm:$0xff]
      %v401 = vld [vmem:[%s2 + $0x60] sm:$0xff]
      %v402 = vld [vmem:[%s2 + $0x68] sm:$0xff]
      %v403 = vld [vmem:[%s2 + $0x70] sm:$0xff]
      %v404 = vld [vmem:[%s2 + $0x78] sm:$0xff]
      %v405 = vld [vmem:[%s2 + $0x80] sm:$0xff]
      %v406 = vld [vmem:[%s2 + $0x88] sm:$0xff]
      %v407 = vld [vmem:[%s2 + $0x90] sm:$0xff]
      %v408 = vld [vmem:[%s2 + $0x98] sm:$0xff]
      %v409 = vld [vmem:[%s2 + $0xa0] sm:$0xff]
      %v410 = vld [vmem:[%s2 + $0xa8] sm:$0xff]
      %v411 = vld [vmem:[%s2 + $0xb0] sm:$0xff]
      %v412 = vld [vmem:[%s2 + $0xb8] sm:$0xff]
      %v413 = vld [vmem:[%s2 + $0xc0] sm:$0xff]
      %v414 = vld [vmem:[%s2 + $0xc8] sm:$0xff]
      %v415 = vld [vmem:[%s2 + $0xd0] sm:$0xff]
      %v416 = vld [vmem:[%s2 + $0xd8] sm:$0xff]
      %v417 = vld [vmem:[%s2 + $0xe0] sm:$0xff]
      %v418 = vld [vmem:[%s2 + $0xe8] sm:$0xff]
      %v419 = vld [vmem:[%s2 + $0xf0] sm:$0xff]
      %v420 = vld [vmem:[%s2 + $0xf8] sm:$0xff]
      %v421 = vld [vmem:[%s2 + $0x100] sm:$0xff]
      %v422 = vld [vmem:[%s2 + $0x108] sm:$0xff]
      %v423 = vld [vmem:[%s2 + $0x110] sm:$0xff]
      %v424 = vld [vmem:[%s2 + $0x118] sm:$0xff]
      %v425 = vld [vmem:[%s2 + $0x120] sm:$0xff]
      %v426 = vld [vmem:[%s2 + $0x128] sm:$0xff]
      %v427 = vld [vmem:[%s2 + $0x130] sm:$0xff]
      %v428 = vld [vmem:[%s2 + $0x138] sm:$0xff]
      %v429 = vld [vmem:[%s2 + $0x140] sm:$0xff]
      %v430 = vld [vmem:[%s2 + $0x148] sm:$0xff]
      %v431 = vld [vmem:[%s2 + $0x150] sm:$0xff]
      %v432 = vld [vmem:[%s2 + $0x158] sm:$0xff]
      %v433 = vld [vmem:[%s2 + $0x160] sm:$0xff]
      %v434 = vld [vmem:[%s2 + $0x168] sm:$0xff]
      %v435 = vld [vmem:[%s2 + $0x170] sm:$0xff]
      %v436 = vld [vmem:[%s2 + $0x178] sm:$0xff]
      %v437 = vld [vmem:[%s2 + $0x180] sm:$0xff]
      %v438 = vld [vmem:[%s2 + $0x188] sm:$0xff]
      %v439 = vld [vmem:[%s2 + $0x190] sm:$0xff]
      %v440 = vld [vmem:[%s2 + $0x198] sm:$0xff]
      %v441 = vld [vmem:[%s2 + $0x1a0] sm:$0xff]
      %v442 = vld [vmem:[%s2 + $0x1a8] sm:$0xff]
      %v443 = vld [vmem:[%s2 + $0x1b0] sm:$0xff]
      %v444 = vld [vmem:[%s2 + $0x1b8] sm:$0xff]
      %v445 = vld [vmem:[%s2 + $0x1c0] sm:$0xff]
      %v446 = vld [vmem:[%s2 + $0x1c8] sm:$0xff]
      %v447 = vld [vmem:[%s2 + $0x1d0] sm:$0xff]
      %v448 = vld [vmem:[%s2 + $0x1d8] sm:$0xff]
      %v449 = vld [vmem:[%s3] sm:$0x3]
      %v451 = vlaneseq
      %v452 = vshrl.u32 %v451, 7
      %v453 = vsub.s32 0, %v452
      %v454 = vrot.slane %v449, %v453
      %v455 = vlaneseq
      %v456 = vshrl.u32 %v455, 7
      %v457 = vsub.s32 1, %v456
      %v458 = vrot.slane %v449, %v457
      %vm461 = vcmask 916480
      %v463 = vsel %vm461, %v384, 0
      %v466 = vsel %vm461, %v386, 0
      %v469 = vsel %vm461, %v388, 0
      %471 = vmatprep.subr.mxu0 %v390
      %472 = vmatpush1.msra.mxu0 %v389
      %473 = vmatprep.subr.mxu0 %v392
      %474 = vmatpush1.msra.mxu0 %v391
      %475 = vmatprep.subr.mxu0 %v394
      %476 = vmatpush1.msra.mxu0 %v393
      %477 = vmatprep.subr.mxu0 %v396
      %478 = vmatpush1.msra.mxu0 %v395
      %479 = vmatprep.subr.mxu0 %v398
      %480 = vmatpush1.msra.mxu0 %v397
      %481 = vmatprep.subr.mxu0 %v400
      %482 = vmatpush1.msra.mxu0 %v399
      %483 = vmatprep.subr.mxu0 %v402
      %484 = vmatpush1.msra.mxu0 %v401
      %485 = vmatprep.subr.mxu0 %v404
      %486 = vmatpush1.msra.mxu0 %v403
      %487 = vmatprep.subr.mxu0 %v406
      %488 = vmatpush1.msra.mxu0 %v405
      %489 = vmatprep.subr.mxu0 %v408
      %490 = vmatpush1.msra.mxu0 %v407
      %491 = vmatprep.subr.mxu0 %v410
      %492 = vmatpush1.msra.mxu0 %v409
      %493 = vmatprep.subr.mxu0 %v412
      %494 = vmatpush1.msra.mxu0 %v411
      %495 = vmatprep.subr.mxu0 %v414
      %496 = vmatpush1.msra.mxu0 %v413
      %497 = vmatprep.subr.mxu0 %v416
      %498 = vmatpush1.msra.mxu0 %v415
      %499 = vmatprep.subr.mxu0 %v418
      %500 = vmatpush1.msra.mxu0 %v417
      %501 = vmatprep.subr.mxu0 %v420
      %502 = vmatpush1.msra.mxu0 %v419
      %503 = vmatprep.subr.mxu0 %v422
      %504 = vmatpush1.msra.mxu0 %v421
      %505 = vmatprep.subr.mxu0 %v424
      %506 = vmatpush1.msra.mxu0 %v423
      %507 = vmatprep.subr.mxu0 %v426
      %508 = vmatpush1.msra.mxu0 %v425
      %509 = vmatprep.subr.mxu0 %v428
      %510 = vmatpush1.msra.mxu0 %v427
      %511 = vmatprep.subr.mxu0 %v430
      %512 = vmatpush1.msra.mxu0 %v429
      %513 = vmatprep.subr.mxu0 %v432
      %514 = vmatpush1.msra.mxu0 %v431
      %515 = vmatprep.subr.mxu0 %v434
      %516 = vmatpush1.msra.mxu0 %v433
      %517 = vmatprep.subr.mxu0 %v436
      %518 = vmatpush1.msra.mxu0 %v435
      %519 = vmatprep.subr.mxu0 %v438
      %520 = vmatpush1.msra.mxu0 %v437
      %521 = vmatprep.subr.mxu0 %v440
      %522 = vmatpush1.msra.mxu0 %v439
      %523 = vmatprep.subr.mxu0 %v442
      %524 = vmatpush1.msra.mxu0 %v441
      %525 = vmatprep.subr.mxu0 %v444
      %526 = vmatpush1.msra.mxu0 %v443
      %527 = vmatprep.subr.mxu0 %v446
      %528 = vmatpush1.msra.mxu0 %v445
      %529 = vmatprep.subr.mxu0 %v448
      %530 = vmatpush1.msra.mxu0 %v447
      %531 = vmatprep.subr.mxu0 0.0
      %532 = vmatpush1.msra.mxu0 0.0
      %533 = vmatprep.subr.mxu0 0.0
      %534 = vmatpush1.msra.mxu0 0.0
      %535 = vmatprep.mubr.f32.mxu0 %v463
      %536 = vmatmul.mubr.f32.gmra.mrb[0].mxu0 %v383
      %v537 = vpop.f32.mrb[0].mxu0
      %v538 = vadd.f32 %v454, %v537
      %v539 = vpop.f32.mrb[0].mxu0
      %v540 = vadd.f32 %v458, %v539
      %541 = vmatprep.mubr.f32.mxu0 %v466
      %542 = vmatmul.mubr.f32.gmra.mrb[0].mxu0 %v385
      %v543 = vpop.f32.mrb[0].mxu0
      %v544 = vadd.f32 %v454, %v543
      %v545 = vpop.f32.mrb[0].mxu0
      %v546 = vadd.f32 %v458, %v545
      %547 = vmatprep.mubr.f32.mxu0 %v469
      %548 = vmatmul.mubr.f32.gmra.mrb[0].mxu0 %v387
      %v549 = vpop.f32.mrb[0].mxu0
      %v550 = vadd.f32 %v454, %v549
      %v551 = vpop.f32.mrb[0].mxu0
      %v552 = vadd.f32 %v458, %v551
      %553 = vdwg.mxu0
      %v554 = vmax.f32 %v538, 0.0
      %v555 = vmax.f32 %v540, 0.0
      %v556 = vmax.f32 %v544, 0.0
      %v557 = vmax.f32 %v546, 0.0
      %v558 = vmax.f32 %v550, 0.0
      %v559 = vmax.f32 %v552, 0.0
      %560 = vst [vmem:[#allocation4] sm:$0xff] 0.0
      %vm561 = vcmask 392192
      %562 = vst.msk [vmem:[#allocation4 + $0x8] sm:$0xff] %vm561, 0.0
      %563 = vst [vmem:[#allocation4 + $0x10] sm:$0xff] 0.0
      %564 = vst.msk [vmem:[#allocation4 + $0x18] sm:$0xff] %vm561, 0.0
      %565 = vst [vmem:[#allocation4 + $0x20] sm:$0x3f] 0.0
      %vm566 = vcmask 390144
      %567 = vst.msk [vmem:[#allocation4 + $0x28] sm:$0x3f] %vm566, 0.0
      %vm574 = vcmask 1041408
      %v575 = vrot.slane %v554, 6
      %v576 = vrot.slane %v555, 6
      %v577 = vrot.slane %v556, 6
      %v578 = vsel %vm574, %v575, %v577
      %v579 = vrot.slane %v557, 6
      %v580 = vsel %vm574, %v576, %v579
      %v581 = vrot.slane %v558, 6
      %v582 = vsel %vm574, %v577, %v581
      %v583 = vrot.slane %v559, 6
      %v584 = vsel %vm574, %v579, %v583
      %591 = vst [vmem:[#allocation4] sm:$0xfc] %v575
      %vm592 = vcmask 392194
      %593 = vst.msk [vmem:[#allocation4 + $0x8] sm:$0xfc] %vm592, %v576
      %594 = vst [vmem:[#allocation4 + $0x10] sm:$0xff] %v578
      %595 = vst.msk [vmem:[#allocation4 + $0x18] sm:$0xff] %vm561, %v580
      %596 = vst [vmem:[#allocation4 + $0x20] sm:$0xf] %v582
      %vm597 = vcmask 388096
      %598 = vst.msk [vmem:[#allocation4 + $0x28] sm:$0xf] %vm597, %v584
      %v599 = vld [vmem:[#allocation4] sm:$0xff]
      %v600 = vld [vmem:[#allocation4 + $0x8] sm:$0xff]
      %v601 = vld [vmem:[#allocation4 + $0x10] sm:$0xff]
      %v602 = vld [vmem:[#allocation4 + $0x18] sm:$0xff]
      %v603 = vld [vmem:[#allocation4 + $0x20] sm:$0xf]
      %v604 = vld [vmem:[#allocation4 + $0x28] sm:$0xf]
      %605 = vst [vmem:[#allocation5] sm:$0xff] %v599
      %606 = vst.msk [vmem:[#allocation5 + $0x8] sm:$0xff] %vm561, %v600
      %607 = vst [vmem:[#allocation5 + $0x28] sm:$0xff] %v601
      %608 = vst.msk [vmem:[#allocation5 + $0x30] sm:$0xff] %vm561, %v602
      %609 = vst [vmem:[#allocation5 + $0x50] sm:$0xf] %v603
      %610 = vst.msk [vmem:[#allocation5 + $0x58] sm:$0xf] %vm597, %v604
      %v611 = vld [vmem:[#allocation4] sm:$0xfe]
      %v612 = vld [vmem:[#allocation4 + $0x8] sm:$0xfe]
      %v613 = vld [vmem:[#allocation4 + $0x10] sm:$0xff]
      %v614 = vld [vmem:[#allocation4 + $0x18] sm:$0xff]
      %v615 = vld [vmem:[#allocation4 + $0x20] sm:$0x1f]
      %v616 = vld [vmem:[#allocation4 + $0x28] sm:$0x1f]
      %vm623 = vcmask 1046528
      %v624 = vrot.slane %v611, 1
      %v625 = vrot.slane %v613, 1
      %v626 = vsel %vm623, %v624, %v625
      %v627 = vrot.slane %v612, 1
      %v628 = vrot.slane %v614, 1
      %v629 = vsel %vm623, %v627, %v628
      %v630 = vrot.slane %v615, 1
      %v631 = vsel %vm623, %v625, %v630
      %v632 = vrot.slane %v616, 1
      %v633 = vsel %vm623, %v628, %v632
      %634 = vrot.lane.b32.xlu0 %v626, 48
      %v635 = vpop.permute.xlu0 %634
      %636 = vrot.lane.b32.xlu0 %v629, 48
      %v637 = vpop.permute.xlu0 %636
      %638 = vrot.lane.b32.xlu0 %v631, 48
      %v639 = vpop.permute.xlu0 %638
      %640 = vrot.lane.b32.xlu0 %v633, 48
      %v641 = vpop.permute.xlu0 %640
      %642 = vrot.lane.b32.xlu0 %v630, 48
      %v643 = vpop.permute.xlu0 %642
      %644 = vrot.lane.b32.xlu0 %v632, 48
      %v645 = vpop.permute.xlu0 %644
      %v646 = vsel %vm561, %v635, %v637
      %v647 = vsel %vm561, %v639, %v641
      %v648 = vsel %vm561, %v643, %v645
      %vm655 = vcmask 1047936
      %656 = vst.msk [vmem:[#allocation5 + $0x8] sm:$0xff] %vm655, %v635
      %vm657 = vcmask 785408
      %658 = vst.msk [vmem:[#allocation5 + $0x10] sm:$0xff] %vm657, %v646
      %659 = vst.msk [vmem:[#allocation5 + $0x30] sm:$0xff] %vm655, %v639
      %660 = vst.msk [vmem:[#allocation5 + $0x38] sm:$0xff] %vm657, %v647
      %vm661 = vcmask 1043840
      %662 = vst.msk [vmem:[#allocation5 + $0x58] sm:$0xf] %vm661, %v643
      %vm663 = vcmask 781312
      %664 = vst.msk [vmem:[#allocation5 + $0x60] sm:$0xf] %vm663, %v648
      %v665 = vld [vmem:[#allocation4] sm:$0xfc]
      %v666 = vld [vmem:[#allocation4 + $0x8] sm:$0xfc]
      %v667 = vld [vmem:[#allocation4 + $0x10] sm:$0xff]
      %v668 = vld [vmem:[#allocation4 + $0x18] sm:$0xff]
      %v669 = vld [vmem:[#allocation4 + $0x20] sm:$0x3f]
      %v670 = vld [vmem:[#allocation4 + $0x28] sm:$0x3f]
      %vm677 = vcmask 1045504
      %v678 = vrot.slane %v665, 2
      %v679 = vrot.slane %v667, 2
      %v680 = vsel %vm677, %v678, %v679
      %v681 = vrot.slane %v666, 2
      %v682 = vrot.slane %v668, 2
      %v683 = vsel %vm677, %v681, %v682
      %v684 = vrot.slane %v669, 2
      %v685 = vsel %vm677, %v679, %v684
      %v686 = vrot.slane %v670, 2
      %v687 = vsel %vm677, %v682, %v686
      %688 = vrot.lane.b32.xlu0 %v680, 96
      %v689 = vpop.permute.xlu0 %688
      %690 = vrot.lane.b32.xlu0 %v683, 96
      %v691 = vpop.permute.xlu0 %690
      %692 = vrot.lane.b32.xlu0 %v685, 96
      %v693 = vpop.permute.xlu0 %692
      %694 = vrot.lane.b32.xlu0 %v687, 96
      %v695 = vpop.permute.xlu0 %694
      %696 = vrot.lane.b32.xlu0 %v684, 96
      %v697 = vpop.permute.xlu0 %696
      %698 = vrot.lane.b32.xlu0 %v686, 96
      %v699 = vpop.permute.xlu0 %698
      %v700 = vsel %vm657, %v689, %v691
      %v701 = vsel %vm657, %v693, %v695
      %v702 = vsel %vm657, %v697, %v699
      %vm712 = vcmask 1048320
      %713 = vst.msk [vmem:[#allocation5 + $0x10] sm:$0xff] %vm712, %v689
      %714 = vst [vmem:[#allocation5 + $0x18] sm:$0xff] %v700
      %vm715 = vcmask 130048
      %716 = vst.msk [vmem:[#allocation5 + $0x20] sm:$0xff] %vm715, %v691
      %717 = vst.msk [vmem:[#allocation5 + $0x38] sm:$0xff] %vm712, %v693
      %718 = vst [vmem:[#allocation5 + $0x40] sm:$0xff] %v701
      %719 = vst.msk [vmem:[#allocation5 + $0x48] sm:$0xff] %vm715, %v695
      %vm720 = vcmask 1044224
      %721 = vst.msk [vmem:[#allocation5 + $0x60] sm:$0xf] %vm720, %v697
      %722 = vst [vmem:[#allocation5 + $0x68] sm:$0xf] %v702
      %vm723 = vcmask 125952
      %724 = vst.msk [vmem:[#allocation5 + $0x70] sm:$0xf] %vm723, %v699
      %v725 = vld [vmem:[#allocation5] sm:$0xff]
      %v726 = vld [vmem:[#allocation5 + $0x8] sm:$0xff]
      %v727 = vld [vmem:[#allocation5 + $0x10] sm:$0xff]
      %v728 = vld [vmem:[#allocation5 + $0x18] sm:$0xff]
      %v729 = vld [vmem:[#allocation5 + $0x20] sm:$0xff]
      %v730 = vld [vmem:[#allocation5 + $0x28] sm:$0xff]
      %v731 = vld [vmem:[#allocation5 + $0x30] sm:$0xff]
      %v732 = vld [vmem:[#allocation5 + $0x38] sm:$0xff]
      %v733 = vld [vmem:[#allocation5 + $0x40] sm:$0xff]
      %v734 = vld [vmem:[#allocation5 + $0x48] sm:$0xff]
      %v735 = vld [vmem:[#allocation5 + $0x50] sm:$0xf]
      %v736 = vld [vmem:[#allocation5 + $0x58] sm:$0xf]
      %v737 = vld [vmem:[#allocation5 + $0x60] sm:$0xf]
      %v738 = vld [vmem:[#allocation5 + $0x68] sm:$0xf]
      %v739 = vld [vmem:[#allocation5 + $0x70] sm:$0xf]
      %v740 = vld [vmem:[%s4] sm:$0xff]
      %v741 = vld [vmem:[%s4 + $0x8] sm:$0xff]
      %v742 = vld [vmem:[%s4 + $0x10] sm:$0xff]
      %v743 = vld [vmem:[%s4 + $0x18] sm:$0xff]
      %v744 = vld [vmem:[%s4 + $0x20] sm:$0xff]
      %v745 = vld [vmem:[%s4 + $0x28] sm:$0xff]
      %v746 = vld [vmem:[%s4 + $0x30] sm:$0xff]
      %v747 = vld [vmem:[%s4 + $0x38] sm:$0xff]
      %v748 = vld [vmem:[%s4 + $0x40] sm:$0xff]
      %v749 = vld [vmem:[%s4 + $0x48] sm:$0xff]
      %v750 = vld [vmem:[%s4 + $0x50] sm:$0xff]
      %v751 = vld [vmem:[%s4 + $0x58] sm:$0xff]
      %v752 = vld [vmem:[%s4 + $0x60] sm:$0xff]
      %v753 = vld [vmem:[%s4 + $0x68] sm:$0xff]
      %v754 = vld [vmem:[%s4 + $0x70] sm:$0xff]
      %v755 = vld [vmem:[%s4 + $0x78] sm:$0xff]
      %v756 = vld [vmem:[%s4 + $0x80] sm:$0xff]
      %v757 = vld [vmem:[%s4 + $0x88] sm:$0xff]
      %v758 = vld [vmem:[%s4 + $0x90] sm:$0xff]
      %v759 = vld [vmem:[%s4 + $0x98] sm:$0xff]
      %v760 = vld [vmem:[%s4 + $0xa0] sm:$0xff]
      %v761 = vld [vmem:[%s4 + $0xa8] sm:$0xff]
      %v762 = vld [vmem:[%s4 + $0xb0] sm:$0xff]
      %v763 = vld [vmem:[%s4 + $0xb8] sm:$0xff]
      %v764 = vld [vmem:[%s4 + $0xc0] sm:$0xff]
      %v765 = vld [vmem:[%s4 + $0xc8] sm:$0xff]
      %v766 = vld [vmem:[%s4 + $0xd0] sm:$0xff]
      %v767 = vld [vmem:[%s4 + $0xd8] sm:$0xff]
      %v768 = vld [vmem:[%s4 + $0xe0] sm:$0xff]
      %v769 = vld [vmem:[%s4 + $0xe8] sm:$0xff]
      %v770 = vld [vmem:[%s4 + $0xf0] sm:$0xff]
      %v771 = vld [vmem:[%s4 + $0xf8] sm:$0xff]
      %v772 = vld [vmem:[%s4 + $0x100] sm:$0xff]
      %v773 = vld [vmem:[%s4 + $0x108] sm:$0xff]
      %v774 = vld [vmem:[%s4 + $0x110] sm:$0xff]
      %v775 = vld [vmem:[%s4 + $0x118] sm:$0xff]
      %v776 = vld [vmem:[%s4 + $0x120] sm:$0xff]
      %v777 = vld [vmem:[%s4 + $0x128] sm:$0xff]
      %v778 = vld [vmem:[%s4 + $0x130] sm:$0xff]
      %v779 = vld [vmem:[%s4 + $0x138] sm:$0xff]
      %v780 = vld [vmem:[%s4 + $0x140] sm:$0xff]
      %v781 = vld [vmem:[%s4 + $0x148] sm:$0xff]
      %v782 = vld [vmem:[%s4 + $0x150] sm:$0xff]
      %v783 = vld [vmem:[%s4 + $0x158] sm:$0xff]
      %v784 = vld [vmem:[%s4 + $0x160] sm:$0xff]
      %v785 = vld [vmem:[%s4 + $0x168] sm:$0xff]
      %v786 = vld [vmem:[%s4 + $0x170] sm:$0xff]
      %v787 = vld [vmem:[%s4 + $0x178] sm:$0xff]
      %v788 = vld [vmem:[%s4 + $0x180] sm:$0xff]
      %v789 = vld [vmem:[%s4 + $0x188] sm:$0xff]
      %v790 = vld [vmem:[%s4 + $0x190] sm:$0xff]
      %v791 = vld [vmem:[%s4 + $0x198] sm:$0xff]
      %v792 = vld [vmem:[%s4 + $0x1a0] sm:$0xff]
      %v793 = vld [vmem:[%s4 + $0x1a8] sm:$0xff]
      %v794 = vld [vmem:[%s4 + $0x1b0] sm:$0xff]
      %v795 = vld [vmem:[%s4 + $0x1b8] sm:$0xff]
      %v796 = vld [vmem:[%s4 + $0x1c0] sm:$0xff]
      %v797 = vld [vmem:[%s4 + $0x1c8] sm:$0xff]
      %v798 = vld [vmem:[%s4 + $0x1d0] sm:$0xff]
      %v799 = vld [vmem:[%s4 + $0x1d8] sm:$0xff]
      %v800 = vld [vmem:[%s4 + $0x1e0] sm:$0xff]
      %v801 = vld [vmem:[%s4 + $0x1e8] sm:$0xff]
      %v802 = vld [vmem:[%s4 + $0x1f0] sm:$0xff]
      %v803 = vld [vmem:[%s4 + $0x1f8] sm:$0xff]
      %v804 = vld [vmem:[%s4 + $0x200] sm:$0xff]
      %v805 = vld [vmem:[%s4 + $0x208] sm:$0xff]
      %v806 = vld [vmem:[%s4 + $0x210] sm:$0xff]
      %v807 = vld [vmem:[%s4 + $0x218] sm:$0xff]
      %v808 = vld [vmem:[%s4 + $0x220] sm:$0xff]
      %v809 = vld [vmem:[%s4 + $0x228] sm:$0xff]
      %v810 = vld [vmem:[%s4 + $0x230] sm:$0xff]
      %v811 = vld [vmem:[%s4 + $0x238] sm:$0xff]
      %v812 = vld [vmem:[%s4 + $0x240] sm:$0xff]
      %v813 = vld [vmem:[%s4 + $0x248] sm:$0xff]
      %v814 = vld [vmem:[%s4 + $0x250] sm:$0xff]
      %v815 = vld [vmem:[%s4 + $0x258] sm:$0xff]
      %v816 = vld [vmem:[%s4 + $0x260] sm:$0xff]
      %v817 = vld [vmem:[%s4 + $0x268] sm:$0xff]
      %v818 = vld [vmem:[%s4 + $0x270] sm:$0xff]
      %v819 = vld [vmem:[%s4 + $0x278] sm:$0xff]
      %v820 = vld [vmem:[%s4 + $0x280] sm:$0xff]
      %v821 = vld [vmem:[%s4 + $0x288] sm:$0xff]
      %v822 = vld [vmem:[%s4 + $0x290] sm:$0xff]
      %v823 = vld [vmem:[%s4 + $0x298] sm:$0xff]
      %v824 = vld [vmem:[%s4 + $0x2a0] sm:$0xff]
      %v825 = vld [vmem:[%s4 + $0x2a8] sm:$0xff]
      %v826 = vld [vmem:[%s4 + $0x2b0] sm:$0xff]
      %v827 = vld [vmem:[%s4 + $0x2b8] sm:$0xff]
      %v828 = vld [vmem:[%s4 + $0x2c0] sm:$0xff]
      %v829 = vld [vmem:[%s4 + $0x2c8] sm:$0xff]
      %v830 = vld [vmem:[%s4 + $0x2d0] sm:$0xff]
      %v831 = vld [vmem:[%s4 + $0x2d8] sm:$0xff]
      %v832 = vld [vmem:[%s4 + $0x2e0] sm:$0xff]
      %v833 = vld [vmem:[%s4 + $0x2e8] sm:$0xff]
      %v834 = vld [vmem:[%s4 + $0x2f0] sm:$0xff]
      %v835 = vld [vmem:[%s4 + $0x2f8] sm:$0xff]
      %v836 = vld [vmem:[%s4 + $0x300] sm:$0xff]
      %v837 = vld [vmem:[%s4 + $0x308] sm:$0xff]
      %v838 = vld [vmem:[%s4 + $0x310] sm:$0xff]
      %v839 = vld [vmem:[%s4 + $0x318] sm:$0xff]
      %v840 = vld [vmem:[%s4 + $0x320] sm:$0xff]
      %v841 = vld [vmem:[%s4 + $0x328] sm:$0xff]
      %v842 = vld [vmem:[%s4 + $0x330] sm:$0xff]
      %v843 = vld [vmem:[%s4 + $0x338] sm:$0xff]
      %v844 = vld [vmem:[%s4 + $0x340] sm:$0xff]
      %v845 = vld [vmem:[%s4 + $0x348] sm:$0xff]
      %v846 = vld [vmem:[%s4 + $0x350] sm:$0xff]
      %v847 = vld [vmem:[%s4 + $0x358] sm:$0xff]
      %v848 = vld [vmem:[%s4 + $0x360] sm:$0xff]
      %v849 = vld [vmem:[%s4 + $0x368] sm:$0xff]
      %v850 = vld [vmem:[%s4 + $0x370] sm:$0xff]
      %v851 = vld [vmem:[%s4 + $0x378] sm:$0xff]
      %v852 = vld [vmem:[%s4 + $0x380] sm:$0xff]
      %v853 = vld [vmem:[%s4 + $0x388] sm:$0xff]
      %v854 = vld [vmem:[%s4 + $0x390] sm:$0xff]
      %v855 = vld [vmem:[%s4 + $0x398] sm:$0xff]
      %v856 = vld [vmem:[%s4 + $0x3a0] sm:$0xff]
      %v857 = vld [vmem:[%s4 + $0x3a8] sm:$0xff]
      %v858 = vld [vmem:[%s4 + $0x3b0] sm:$0xff]
      %v859 = vld [vmem:[%s4 + $0x3b8] sm:$0xff]
      %v860 = vld [vmem:[%s4 + $0x3c0] sm:$0xff]
      %v861 = vld [vmem:[%s4 + $0x3c8] sm:$0xff]
      %v862 = vld [vmem:[%s4 + $0x3d0] sm:$0xff]
      %v863 = vld [vmem:[%s4 + $0x3d8] sm:$0xff]
      %v864 = vld [vmem:[%s4 + $0x3e0] sm:$0xff]
      %v865 = vld [vmem:[%s4 + $0x3e8] sm:$0xff]
      %v866 = vld [vmem:[%s4 + $0x3f0] sm:$0xff]
      %v867 = vld [vmem:[%s4 + $0x3f8] sm:$0xff]
      %v868 = vld [vmem:[%s4 + $0x400] sm:$0xff]
      %v869 = vld [vmem:[%s4 + $0x408] sm:$0xff]
      %v870 = vld [vmem:[%s4 + $0x410] sm:$0xff]
      %v871 = vld [vmem:[%s4 + $0x418] sm:$0xff]
      %v872 = vld [vmem:[%s5] sm:$0x3]
      %v874 = vlaneseq
      %v875 = vshrl.u32 %v874, 7
      %v876 = vsub.s32 0, %v875
      %v877 = vrot.slane %v872, %v876
      %v878 = vlaneseq
      %v879 = vshrl.u32 %v878, 7
      %v880 = vsub.s32 1, %v879
      %v881 = vrot.slane %v872, %v880
      %v885 = vsel %vm715, %v729, 0
      %v888 = vsel %vm715, %v734, 0
      %v891 = vsel %vm715, %v739, 0
      %893 = vmatprep.subr.mxu0 %v741
      %894 = vmatpush1.msra.mxu0 %v740
      %895 = vmatprep.subr.mxu0 %v743
      %896 = vmatpush1.msra.mxu0 %v742
      %897 = vmatprep.subr.mxu0 %v745
      %898 = vmatpush1.msra.mxu0 %v744
      %899 = vmatprep.subr.mxu0 %v747
      %900 = vmatpush1.msra.mxu0 %v746
      %901 = vmatprep.subr.mxu0 %v749
      %902 = vmatpush1.msra.mxu0 %v748
      %903 = vmatprep.subr.mxu0 %v751
      %904 = vmatpush1.msra.mxu0 %v750
      %905 = vmatprep.subr.mxu0 %v753
      %906 = vmatpush1.msra.mxu0 %v752
      %907 = vmatprep.subr.mxu0 %v755
      %908 = vmatpush1.msra.mxu0 %v754
      %909 = vmatprep.subr.mxu0 %v757
      %910 = vmatpush1.msra.mxu0 %v756
      %911 = vmatprep.subr.mxu0 %v759
      %912 = vmatpush1.msra.mxu0 %v758
      %913 = vmatprep.subr.mxu0 %v761
      %914 = vmatpush1.msra.mxu0 %v760
      %915 = vmatprep.subr.mxu0 %v763
      %916 = vmatpush1.msra.mxu0 %v762
      %917 = vmatprep.subr.mxu0 %v765
      %918 = vmatpush1.msra.mxu0 %v764
      %919 = vmatprep.subr.mxu0 %v767
      %920 = vmatpush1.msra.mxu0 %v766
      %921 = vmatprep.subr.mxu0 %v769
      %922 = vmatpush1.msra.mxu0 %v768
      %923 = vmatprep.subr.mxu0 %v771
      %924 = vmatpush1.msra.mxu0 %v770
      %925 = vmatprep.subr.mxu0 %v773
      %926 = vmatpush1.msra.mxu0 %v772
      %927 = vmatprep.subr.mxu0 %v775
      %928 = vmatpush1.msra.mxu0 %v774
      %929 = vmatprep.subr.mxu0 %v777
      %930 = vmatpush1.msra.mxu0 %v776
      %931 = vmatprep.subr.mxu0 %v779
      %932 = vmatpush1.msra.mxu0 %v778
      %933 = vmatprep.subr.mxu0 %v781
      %934 = vmatpush1.msra.mxu0 %v780
      %935 = vmatprep.subr.mxu0 %v783
      %936 = vmatpush1.msra.mxu0 %v782
      %937 = vmatprep.subr.mxu0 %v785
      %938 = vmatpush1.msra.mxu0 %v784
      %939 = vmatprep.subr.mxu0 %v787
      %940 = vmatpush1.msra.mxu0 %v786
      %941 = vmatprep.subr.mxu0 %v789
      %942 = vmatpush1.msra.mxu0 %v788
      %943 = vmatprep.subr.mxu0 %v791
      %944 = vmatpush1.msra.mxu0 %v790
      %945 = vmatprep.subr.mxu0 %v793
      %946 = vmatpush1.msra.mxu0 %v792
      %947 = vmatprep.subr.mxu0 %v795
      %948 = vmatpush1.msra.mxu0 %v794
      %949 = vmatprep.subr.mxu0 %v797
      %950 = vmatpush1.msra.mxu0 %v796
      %951 = vmatprep.subr.mxu0 %v799
      %952 = vmatpush1.msra.mxu0 %v798
      %953 = vmatprep.subr.mxu0 %v801
      %954 = vmatpush1.msra.mxu0 %v800
      %955 = vmatprep.subr.mxu0 %v803
      %956 = vmatpush1.msra.mxu0 %v802
      %957 = vmatprep.mubr.f32.mxu0 %v726
      %958 = vmatmul.mubr.f32.gmra.mrb[0].mxu0 %v725
      %v959 = vpop.f32.mrb[0].mxu0
      %v960 = vadd.f32 %v877, %v959
      %v961 = vpop.f32.mrb[0].mxu0
      %v962 = vadd.f32 %v881, %v961
      %963 = vmatprep.mubr.f32.mxu0 %v731
      %964 = vmatmul.mubr.f32.gmra.mrb[0].mxu0 %v730
      %v965 = vpop.f32.mrb[0].mxu0
      %v966 = vadd.f32 %v877, %v965
      %v967 = vpop.f32.mrb[0].mxu0
      %v968 = vadd.f32 %v881, %v967
      %969 = vmatprep.mubr.f32.mxu0 %v736
      %970 = vmatmul.mubr.f32.gmra.mrb[0].mxu0 %v735
      %v971 = vpop.f32.mrb[0].mxu0
      %v972 = vadd.f32 %v877, %v971
      %v973 = vpop.f32.mrb[0].mxu0
      %v974 = vadd.f32 %v881, %v973
      %975 = vdwg.mxu0
      %976 = vmatprep.subr.mxu0 %v805
      %977 = vmatpush1.msra.mxu0 %v804
      %978 = vmatprep.subr.mxu0 %v807
      %979 = vmatpush1.msra.mxu0 %v806
      %980 = vmatprep.subr.mxu0 %v809
      %981 = vmatpush1.msra.mxu0 %v808
      %982 = vmatprep.subr.mxu0 %v811
      %983 = vmatpush1.msra.mxu0 %v810
      %984 = vmatprep.subr.mxu0 %v813
      %985 = vmatpush1.msra.mxu0 %v812
      %986 = vmatprep.subr.mxu0 %v815
      %987 = vmatpush1.msra.mxu0 %v814
      %988 = vmatprep.subr.mxu0 %v817
      %989 = vmatpush1.msra.mxu0 %v816
      %990 = vmatprep.subr.mxu0 %v819
      %991 = vmatpush1.msra.mxu0 %v818
      %992 = vmatprep.subr.mxu0 %v821
      %993 = vmatpush1.msra.mxu0 %v820
      %994 = vmatprep.subr.mxu0 %v823
      %995 = vmatpush1.msra.mxu0 %v822
      %996 = vmatprep.subr.mxu0 %v825
      %997 = vmatpush1.msra.mxu0 %v824
      %998 = vmatprep.subr.mxu0 %v827
      %999 = vmatpush1.msra.mxu0 %v826
      %1000 = vmatprep.subr.mxu0 %v829
      %1001 = vmatpush1.msra.mxu0 %v828
      %1002 = vmatprep.subr.mxu0 %v831
      %1003 = vmatpush1.msra.mxu0 %v830
      %1004 = vmatprep.subr.mxu0 %v833
      %1005 = vmatpush1.msra.mxu0 %v832
      %1006 = vmatprep.subr.mxu0 %v835
      %1007 = vmatpush1.msra.mxu0 %v834
      %1008 = vmatprep.subr.mxu0 %v837
      %1009 = vmatpush1.msra.mxu0 %v836
      %1010 = vmatprep.subr.mxu0 %v839
      %1011 = vmatpush1.msra.mxu0 %v838
      %1012 = vmatprep.subr.mxu0 %v841
      %1013 = vmatpush1.msra.mxu0 %v840
      %1014 = vmatprep.subr.mxu0 %v843
      %1015 = vmatpush1.msra.mxu0 %v842
      %1016 = vmatprep.subr.mxu0 %v845
      %1017 = vmatpush1.msra.mxu0 %v844
      %1018 = vmatprep.subr.mxu0 %v847
      %1019 = vmatpush1.msra.mxu0 %v846
      %1020 = vmatprep.subr.mxu0 %v849
      %1021 = vmatpush1.msra.mxu0 %v848
      %1022 = vmatprep.subr.mxu0 %v851
      %1023 = vmatpush1.msra.mxu0 %v850
      %1024 = vmatprep.subr.mxu0 %v853
      %1025 = vmatpush1.msra.mxu0 %v852
      %1026 = vmatprep.subr.mxu0 %v855
      %1027 = vmatpush1.msra.mxu0 %v854
      %1028 = vmatprep.subr.mxu0 %v857
      %1029 = vmatpush1.msra.mxu0 %v856
      %1030 = vmatprep.subr.mxu0 %v859
      %1031 = vmatpush1.msra.mxu0 %v858
      %1032 = vmatprep.subr.mxu0 %v861
      %1033 = vmatpush1.msra.mxu0 %v860
      %1034 = vmatprep.subr.mxu0 %v863
      %1035 = vmatpush1.msra.mxu0 %v862
      %1036 = vmatprep.subr.mxu0 %v865
      %1037 = vmatpush1.msra.mxu0 %v864
      %1038 = vmatprep.subr.mxu0 %v867
      %1039 = vmatpush1.msra.mxu0 %v866
      %1040 = vmatprep.mubr.f32.mxu0 %v728
      %1041 = vmatmul.mubr.f32.gmra.mrb[0].mxu0 %v727
      %v1042 = vpop.f32.mrb[0].mxu0
      %v1043 = vadd.f32 %v960, %v1042
      %v1044 = vpop.f32.mrb[0].mxu0
      %v1045 = vadd.f32 %v962, %v1044
      %1046 = vmatprep.mubr.f32.mxu0 %v733
      %1047 = vmatmul.mubr.f32.gmra.mrb[0].mxu0 %v732
      %v1048 = vpop.f32.mrb[0].mxu0
      %v1049 = vadd.f32 %v966, %v1048
      %v1050 = vpop.f32.mrb[0].mxu0
      %v1051 = vadd.f32 %v968, %v1050
      %1052 = vmatprep.mubr.f32.mxu0 %v738
      %1053 = vmatmul.mubr.f32.gmra.mrb[0].mxu0 %v737
      %v1054 = vpop.f32.mrb[0].mxu0
      %v1055 = vadd.f32 %v972, %v1054
      %v1056 = vpop.f32.mrb[0].mxu0
      %v1057 = vadd.f32 %v974, %v1056
      %1058 = vdwg.mxu0
      %1059 = vmatprep.subr.mxu0 %v869
      %1060 = vmatpush1.msra.mxu0 %v868
      %1061 = vmatprep.subr.mxu0 %v871
      %1062 = vmatpush1.msra.mxu0 %v870
      %1063 = vmatprep.subr.mxu0 0.0
      %1064 = vmatpush1.msra.mxu0 0.0
      %1065 = vmatprep.subr.mxu0 0.0
      %1066 = vmatpush1.msra.mxu0 0.0
      %1067 = vmatprep.subr.mxu0 0.0
      %1068 = vmatpush1.msra.mxu0 0.0
      %1069 = vmatprep.subr.mxu0 0.0
      %1070 = vmatpush1.msra.mxu0 0.0
      %1071 = vmatprep.subr.mxu0 0.0
      %1072 = vmatpush1.msra.mxu0 0.0
      %1073 = vmatprep.subr.mxu0 0.0
      %1074 = vmatpush1.msra.mxu0 0.0
      %1075 = vmatprep.subr.mxu0 0.0
      %1076 = vmatpush1.msra.mxu0 0.0
      %1077 = vmatprep.subr.mxu0 0.0
      %1078 = vmatpush1.msra.mxu0 0.0
      %1079 = vmatprep.subr.mxu0 0.0
      %1080 = vmatpush1.msra.mxu0 0.0
      %1081 = vmatprep.subr.mxu0 0.0
      %1082 = vmatpush1.msra.mxu0 0.0
      %1083 = vmatprep.subr.mxu0 0.0
      %1084 = vmatpush1.msra.mxu0 0.0
      %1085 = vmatprep.subr.mxu0 0.0
      %1086 = vmatpush1.msra.mxu0 0.0
      %1087 = vmatprep.subr.mxu0 0.0
      %1088 = vmatpush1.msra.mxu0 0.0
      %1089 = vmatprep.subr.mxu0 0.0
      %1090 = vmatpush1.msra.mxu0 0.0
      %1091 = vmatprep.subr.mxu0 0.0
      %1092 = vmatpush1.msra.mxu0 0.0
      %1093 = vmatprep.subr.mxu0 0.0
      %1094 = vmatpush1.msra.mxu0 0.0
      %1095 = vmatprep.subr.mxu0 0.0
      %1096 = vmatpush1.msra.mxu0 0.0
      %1097 = vmatprep.subr.mxu0 0.0
      %1098 = vmatpush1.msra.mxu0 0.0
      %1099 = vmatprep.subr.mxu0 0.0
      %1100 = vmatpush1.msra.mxu0 0.0
      %1101 = vmatprep.subr.mxu0 0.0
      %1102 = vmatpush1.msra.mxu0 0.0
      %1103 = vmatprep.subr.mxu0 0.0
      %1104 = vmatpush1.msra.mxu0 0.0
      %1105 = vmatprep.subr.mxu0 0.0
      %1106 = vmatpush1.msra.mxu0 0.0
      %1107 = vmatprep.subr.mxu0 0.0
      %1108 = vmatpush1.msra.mxu0 0.0
      %1109 = vmatprep.subr.mxu0 0.0
      %1110 = vmatpush1.msra.mxu0 0.0
      %1111 = vmatprep.subr.mxu0 0.0
      %1112 = vmatpush1.msra.mxu0 0.0
      %1113 = vmatprep.subr.mxu0 0.0
      %1114 = vmatpush1.msra.mxu0 0.0
      %1115 = vmatprep.subr.mxu0 0.0
      %1116 = vmatpush1.msra.mxu0 0.0
      %1117 = vmatprep.subr.mxu0 0.0
      %1118 = vmatpush1.msra.mxu0 0.0
      %1119 = vmatprep.subr.mxu0 0.0
      %1120 = vmatpush1.msra.mxu0 0.0
      %1121 = vmatprep.subr.mxu0 0.0
      %1122 = vmatpush1.msra.mxu0 0.0
      %1123 = vmatprep.mubr.f32.mxu0 0.0
      %1124 = vmatmul.mubr.f32.gmra.mrb[0].mxu0 %v885
      %v1125 = vpop.f32.mrb[0].mxu0
      %v1126 = vadd.f32 %v1043, %v1125
      %v1127 = vpop.f32.mrb[0].mxu0
      %v1128 = vadd.f32 %v1045, %v1127
      %1129 = vmatprep.mubr.f32.mxu0 0.0
      %1130 = vmatmul.mubr.f32.gmra.mrb[0].mxu0 %v888
      %v1131 = vpop.f32.mrb[0].mxu0
      %v1132 = vadd.f32 %v1049, %v1131
      %v1133 = vpop.f32.mrb[0].mxu0
      %v1134 = vadd.f32 %v1051, %v1133
      %1135 = vmatprep.mubr.f32.mxu0 0.0
      %1136 = vmatmul.mubr.f32.gmra.mrb[0].mxu0 %v891
      %v1137 = vpop.f32.mrb[0].mxu0
      %v1138 = vadd.f32 %v1055, %v1137
      %v1139 = vpop.f32.mrb[0].mxu0
      %v1140 = vadd.f32 %v1057, %v1139
      %1141 = vdwg.mxu0
      %1142 = vst [vmem:[%s271] sm:$0xff] %v1126
      %1143 = vst.msk [vmem:[%s271 + $0x8] sm:$0xff] %vm355, %v1128
      %1144 = vst [vmem:[%s271 + $0x10] sm:$0xff] %v1132
      %1145 = vst.msk [vmem:[%s271 + $0x18] sm:$0xff] %vm355, %v1134
      %1146 = vst [vmem:[%s271 + $0x20] sm:$0xf] %v1138
      %vm1147 = vcmask 257024
      %1148 = vst.msk [vmem:[%s271 + $0x28] sm:$0xf] %vm1147, %v1140
      %p1149 = scmp.lt.s32.totalorder %s17, 1
      %s1150 = scalar_select %p1149, %s17, 1
      %s1151 = smul.addr %s1150, 6
      %s1152 = smul.addr %s1151, 8
      %s1153 = scalar_lea.vmem %s6, %s1152
      // Predicated region
      $region45: #{double_conv_up_forward.1} parent=43 // pred_check
        %p1154 = pneg %p171
      $region46: #{double_conv_up_forward.1} parent=43 // pred_check_branch
        %1156 = sbr.rel (%p1154) target = $region48
      $region47: #{double_conv_up_forward.1} parent=43 // pred_region
        _
      $region48: #{double_conv_up_forward.1} parent=43 // pred_fallthru
        _
    $region44: #{double_conv_up_forward.1} parent=5 // pred_fallthru
      _
    %p1157 = scmp.le.s32.totalorder 2, %s12
    // Predicated region
    $region49: #{double_conv_up_forward.1} parent=5 // pred_check
      %p1158 = pneg %p1157
    $region50: #{double_conv_up_forward.1} parent=5 // pred_check_branch
      %1160 = sbr.rel (%p1158) target = $region52
    $region51: #{double_conv_up_forward.1} parent=5 // pred_region
      %s1161 = ssub.s32 %s12, 2
      // Predicated region
      $region53: #{double_conv_up_forward.1} parent=51 // pred_check
        %p1162 = pneg %p177
      $region54: #{double_conv_up_forward.1} parent=51 // pred_check_branch
        %1164 = sbr.rel (%p1162) target = $region56
      $region55: #{double_conv_up_forward.1} parent=51 // pred_region
        %p1165 = scmp.lt.s32.totalorder %s18, 1
        %s1166 = scalar_select %p1165, %s18, 1
        %s1167 = smul.addr %s1166, 6
        %s1168 = smul.addr %s1167, 8
        %s1169 = scalar_lea.vmem %s6, %s1168
      $region56: #{double_conv_up_forward.1} parent=51 // pred_fallthru
        _
    $region52: #{double_conv_up_forward.1} parent=5 // pred_fallthru
      _
  $region6: #{double_conv_up_forward.1} parent=0 // loop_footer
    %s16 = sadd.s32 1, %s12
  $region7: #{double_conv_up_forward.1} parent=0 // loop_footer_branch
    %11 = sbr.rel target = $region3
  $region8: #{double_conv_up_forward.1} parent=0 // loop_exit
    _

</llo_original>
